<compile_context>
chip_gen: v6e
topology: v6e:2x2x1
jax: 0.10.0
libtpu: 0.0.40
codegen_flags: <defaults>
</compile_context>

<pallas_src>
import functools

import jax
import jax.numpy as jnp
from jax import lax
from jax.experimental import pallas as pl
from jax.experimental.pallas import tpu as pltpu

H_IN, W_IN = 239, 239      # conv input spatial size implied by the 116*116 view
H_DS, W_DS = 120, 120      # even-index downsampled size (stride=2, dilation=2)
H_OUT, W_OUT = 116, 116    # conv output spatial size
KH = KW = 5
CIN = 3

# Double-buffered input tile: 2 * (16*3*120*120*4B) ~ 5.5 MiB -> fits the 16 MiB
# default scoped VMEM on v5e and the 32 MiB defaults on v6e/v7x with headroom.
B_TILE_MAX = 16


def ground_plane_kernel(bias_ref, w_ref, x_ref, o_ref, *, b_tile):
    """One batch tile per grid step.

    bias_ref: (1,)                   SMEM  folded bias = conv_b*sum(fc_w) + fc_b
    w_ref:    (3, 120, 120)          VMEM  folded conv∘fc effective weight
    x_ref:    (b_tile, 3, 120, 120)  VMEM  even-downsampled input tile
    o_ref:    (b_tile, 1)            VMEM  per-element outputs
    """
    bias = bias_ref[0]
    for b in range(b_tile):                 # static unroll, b_tile is small
        s = jnp.float32(0.0)
        for c in range(CIN):
            # Slice the refs per (b, c): ~45 live vregs max (x slice + w slice
            # + product), so no spills; Mosaic streams VMEM loads instead of
            # materializing the whole (b_tile,3,120,120) block.
            s = s + jnp.sum(x_ref[b, c, :, :] * w_ref[c, :, :])
        # Fill the (b_tile,1) output block row by row; HBM writeback is one
        # small DMA per tile (amortized over b_tile elements).
        o_ref[pl.ds(b, 1), :] = (s + bias).reshape(1, 1)


def ground_plane_net(x, conv_w, conv_b, fc_w, fc_b):
    """x: (N, 3, 239, 239) f32 -> (N, 1) f32, matching GroundPlaneNet.forward."""
    n = x.shape[0]
    assert x.shape[1:] == (CIN, H_IN, W_IN)
    assert H_DS == H_OUT + KH - 1 and W_DS == W_OUT + KW - 1

    # stride=2 + dilation=2 => the conv only ever reads even rows/cols
    # (index 2*o + 2*k <= 238), so the downsample is a lossless pre-slice.
    # TODO(synk): at large N this strided HBM->HBM copy could be folded into the
    # kernel DMA (pl.ANY + strided manual copy) to halve input HBM traffic.
    x_ds = x[:, :, ::2, ::2].astype(jnp.float32)                 # (N, 3, 120, 120)

    # One-time fold of conv -> flatten -> Linear into a single weight:
    # W_eff[c,i,j] = sum_{ky,kx} conv_w[c,ky,kx] * fc_w2d[i-ky, j-kx]
    # (full "mathematical" convolution of the 116x116 fc weight with each 5x5
    # channel kernel, done here as a correlation with the flipped kernel).
    fc_w2d = fc_w.reshape(H_OUT, W_OUT).astype(jnp.float32)      # row-major == .view()
    k_flip = conv_w[0, :, ::-1, ::-1].astype(jnp.float32)[:, None]   # (3, 1, 5, 5) OIHW
    w_eff = lax.conv_general_dilated(
        fc_w2d[None, None], k_flip, window_strides=(1, 1),
        padding=((KH - 1, KH - 1), (KW - 1, KW - 1)),
        dimension_numbers=("NCHW", "OIHW", "NCHW"))[0]           # (3, 120, 120)
    bias_eff = (conv_b.reshape(()) * jnp.sum(fc_w.astype(jnp.float32))
                + fc_b.reshape(())).astype(jnp.float32).reshape(1)   # (1,)

    # Batch tiling: process b_tile elements per grid step; pad N if needed.
    b_tile = min(B_TILE_MAX, n)
    n_pad = pl.cdiv(n, b_tile) * b_tile
    if n_pad != n:
        x_ds = jnp.pad(x_ds, ((0, n_pad - n), (0, 0), (0, 0), (0, 0)))

    out = pl.pallas_call(
        functools.partial(ground_plane_kernel, b_tile=b_tile),
        out_shape=jax.ShapeDtypeStruct((n_pad, 1), jnp.float32),
        grid=(n_pad // b_tile,),
        in_specs=[
            pl.BlockSpec(memory_space=pltpu.MemorySpace.SMEM),           # bias_eff
            pl.BlockSpec((CIN, H_DS, W_DS), lambda i: (0, 0, 0)),        # W_eff (resident)
            pl.BlockSpec((b_tile, CIN, H_DS, W_DS), lambda i: (i, 0, 0, 0)),
        ],
        out_specs=pl.BlockSpec((b_tile, 1), lambda i: (i, 0)),
        compiler_params=pltpu.CompilerParams(
            dimension_semantics=("parallel",)),   # batch tiles shard across v7x's 2 TCs
    )(bias_eff, w_eff, x_ds)
    return out[:n]


def reference(x, conv_w, conv_b, fc_w, fc_b):
    """Pure-JAX reference mirroring the (un-folded) PyTorch forward."""
    conv_out = lax.conv_general_dilated(
        x.astype(jnp.float32), conv_w.astype(jnp.float32),
        window_strides=(2, 2), padding="VALID", rhs_dilation=(2, 2),
        dimension_numbers=("NCHW", "OIHW", "NCHW"))
    conv_out = conv_out + conv_b.reshape(1, 1, 1, 1)
    flat = conv_out.reshape(x.shape[0], H_OUT * W_OUT)
    return flat @ fc_w.T + fc_b


if __name__ == "__main__":
    key = jax.random.PRNGKey(0)
    k1, k2, k3, k4, k5 = jax.random.split(key, 5)

    # batch=2; spatial size 239 is forced by the 116*116 view in forward().
    x = jax.random.normal(k1, (2, CIN, H_IN, W_IN), jnp.float32)

    # Deterministic synthetic parameters (shapes from GroundPlaneNet.__init__).
    conv_w = jax.random.normal(k2, (1, CIN, KH, KW), jnp.float32) * 0.05
    conv_b = jax.random.normal(k3, (1,), jnp.float32) * 0.05
    fc_w = jax.random.normal(k4, (1, H_OUT * W_OUT), jnp.float32) * 0.01
    fc_b = jax.random.normal(k5, (1,), jnp.float32) * 0.01

    out = ground_plane_net(x, conv_w, conv_b, fc_w, fc_b)
    out = jax.block_until_ready(out)

    ref = reference(x, conv_w, conv_b, fc_w, fc_b)
    assert out.shape == (2, 1), out.shape
    assert jnp.allclose(out, ref, rtol=1e-3, atol=1e-3), (out, ref)

    print("KERNEL_OK")
</pallas_src>

<mosaic_0001>
module attributes {stable_mosaic.version = 11 : i64} {
  func.func @ground_plane_kernel(%arg0: i32, %arg1: memref<1xf32, #tpu.memory_space<smem>>, %arg2: memref<3x120x120xf32, #tpu.memory_space<vmem>>, %arg3: memref<2x3x120x120xf32, #tpu.memory_space<vmem>>, %arg4: memref<2x1xf32, #tpu.memory_space<vmem>>) attributes {dimension_semantics = [#tpu.dimension_semantics<parallel>], iteration_bounds = array<i64: 1>, scalar_prefetch = 0 : i64, scratch_operands = 0 : i64, tpu.core_type = #tpu.core_type<tc>, window_params = [{transform_indices = @transform_0, window_bounds = array<i64: 1>}, {pipeline_mode = #tpu.pipeline_mode<synchronous>, transform_indices = @transform_1, window_bounds = array<i64: 3, 120, 120>}, {transform_indices = @transform_2, window_bounds = array<i64: 2, 3, 120, 120>}, {transform_indices = @transform_3, window_bounds = array<i64: 2, 1>}]} {
    %c0 = arith.constant 0 : index
    %0 = memref.load %arg1[%c0] : memref<1xf32, #tpu.memory_space<smem>>
    %c0_0 = arith.constant 0 : index
    %c0_1 = arith.constant 0 : index
    %c0_2 = arith.constant 0 : index
    %c0_3 = arith.constant 0 : index
    %1 = vector.load %arg3[%c0_0, %c0_1, %c0_2, %c0_3] : memref<2x3x120x120xf32, #tpu.memory_space<vmem>>, vector<1x1x120x120xf32>
    %2 = vector.shape_cast %1 : vector<1x1x120x120xf32> to vector<120x120xf32>
    %c0_4 = arith.constant 0 : index
    %c0_5 = arith.constant 0 : index
    %c0_6 = arith.constant 0 : index
    %3 = vector.load %arg2[%c0_4, %c0_5, %c0_6] : memref<3x120x120xf32, #tpu.memory_space<vmem>>, vector<1x120x120xf32>
    %4 = vector.shape_cast %3 : vector<1x120x120xf32> to vector<120x120xf32>
    %5 = arith.mulf %2, %4 : vector<120x120xf32>
    %6 = vector.shape_cast %5 : vector<120x120xf32> to vector<1x120x120xf32>
    %cst = arith.constant dense<0.000000e+00> : vector<1xf32>
    %7 = vector.multi_reduction <add>, %6, %cst [1, 2] : vector<1x120x120xf32> to vector<1xf32>
    %8 = vector.shape_cast %7 : vector<1xf32> to vector<1x1x1xf32>
    %9 = vector.extract %8[0, 0, 0] : f32 from vector<1x1x1xf32>
    %cst_7 = arith.constant 0.000000e+00 : f32
    %10 = arith.addf %cst_7, %9 : f32
    %c0_8 = arith.constant 0 : index
    %c1 = arith.constant 1 : index
    %c0_9 = arith.constant 0 : index
    %c0_10 = arith.constant 0 : index
    %11 = vector.load %arg3[%c0_8, %c1, %c0_9, %c0_10] : memref<2x3x120x120xf32, #tpu.memory_space<vmem>>, vector<1x1x120x120xf32>
    %12 = vector.shape_cast %11 : vector<1x1x120x120xf32> to vector<120x120xf32>
    %c1_11 = arith.constant 1 : index
    %c0_12 = arith.constant 0 : index
    %c0_13 = arith.constant 0 : index
    %13 = vector.load %arg2[%c1_11, %c0_12, %c0_13] : memref<3x120x120xf32, #tpu.memory_space<vmem>>, vector<1x120x120xf32>
    %14 = vector.shape_cast %13 : vector<1x120x120xf32> to vector<120x120xf32>
    %15 = arith.mulf %12, %14 : vector<120x120xf32>
    %16 = vector.shape_cast %15 : vector<120x120xf32> to vector<1x120x120xf32>
    %cst_14 = arith.constant dense<0.000000e+00> : vector<1xf32>
    %17 = vector.multi_reduction <add>, %16, %cst_14 [1, 2] : vector<1x120x120xf32> to vector<1xf32>
    %18 = vector.shape_cast %17 : vector<1xf32> to vector<1x1x1xf32>
    %19 = vector.extract %18[0, 0, 0] : f32 from vector<1x1x1xf32>
    %20 = arith.addf %10, %19 : f32
    %c0_15 = arith.constant 0 : index
    %c2 = arith.constant 2 : index
    %c0_16 = arith.constant 0 : index
    %c0_17 = arith.constant 0 : index
    %21 = vector.load %arg3[%c0_15, %c2, %c0_16, %c0_17] : memref<2x3x120x120xf32, #tpu.memory_space<vmem>>, vector<1x1x120x120xf32>
    %22 = vector.shape_cast %21 : vector<1x1x120x120xf32> to vector<120x120xf32>
    %c2_18 = arith.constant 2 : index
    %c0_19 = arith.constant 0 : index
    %c0_20 = arith.constant 0 : index
    %23 = vector.load %arg2[%c2_18, %c0_19, %c0_20] : memref<3x120x120xf32, #tpu.memory_space<vmem>>, vector<1x120x120xf32>
    %24 = vector.shape_cast %23 : vector<1x120x120xf32> to vector<120x120xf32>
    %25 = arith.mulf %22, %24 : vector<120x120xf32>
    %26 = vector.shape_cast %25 : vector<120x120xf32> to vector<1x120x120xf32>
    %cst_21 = arith.constant dense<0.000000e+00> : vector<1xf32>
    %27 = vector.multi_reduction <add>, %26, %cst_21 [1, 2] : vector<1x120x120xf32> to vector<1xf32>
    %28 = vector.shape_cast %27 : vector<1xf32> to vector<1x1x1xf32>
    %29 = vector.extract %28[0, 0, 0] : f32 from vector<1x1x1xf32>
    %30 = arith.addf %20, %29 : f32
    %31 = arith.addf %30, %0 : f32
    %32 = vector.broadcast %31 : f32 to vector<1x1xf32>
    %c0_22 = arith.constant 0 : index
    %c0_23 = arith.constant 0 : index
    %33 = vector.load %arg4[%c0_22, %c0_23] : memref<2x1xf32, #tpu.memory_space<vmem>>, vector<1x1xf32>
    tpu.vector_store %arg4[%c0_22, %c0_23], %32 {strides = array<i32>} : memref<2x1xf32, #tpu.memory_space<vmem>>, vector<1x1xf32>,
    %c1_24 = arith.constant 1 : index
    %c0_25 = arith.constant 0 : index
    %c0_26 = arith.constant 0 : index
    %c0_27 = arith.constant 0 : index
    %34 = vector.load %arg3[%c1_24, %c0_25, %c0_26, %c0_27] : memref<2x3x120x120xf32, #tpu.memory_space<vmem>>, vector<1x1x120x120xf32>
    %35 = vector.shape_cast %34 : vector<1x1x120x120xf32> to vector<120x120xf32>
    %c0_28 = arith.constant 0 : index
    %c0_29 = arith.constant 0 : index
    %c0_30 = arith.constant 0 : index
    %36 = vector.load %arg2[%c0_28, %c0_29, %c0_30] : memref<3x120x120xf32, #tpu.memory_space<vmem>>, vector<1x120x120xf32>
    %37 = vector.shape_cast %36 : vector<1x120x120xf32> to vector<120x120xf32>
    %38 = arith.mulf %35, %37 : vector<120x120xf32>
    %39 = vector.shape_cast %38 : vector<120x120xf32> to vector<1x120x120xf32>
    %cst_31 = arith.constant dense<0.000000e+00> : vector<1xf32>
    %40 = vector.multi_reduction <add>, %39, %cst_31 [1, 2] : vector<1x120x120xf32> to vector<1xf32>
    %41 = vector.shape_cast %40 : vector<1xf32> to vector<1x1x1xf32>
    %42 = vector.extract %41[0, 0, 0] : f32 from vector<1x1x1xf32>
    %cst_32 = arith.constant 0.000000e+00 : f32
    %43 = arith.addf %cst_32, %42 : f32
    %c1_33 = arith.constant 1 : index
    %c1_34 = arith.constant 1 : index
    %c0_35 = arith.constant 0 : index
    %c0_36 = arith.constant 0 : index
    %44 = vector.load %arg3[%c1_33, %c1_34, %c0_35, %c0_36] : memref<2x3x120x120xf32, #tpu.memory_space<vmem>>, vector<1x1x120x120xf32>
    %45 = vector.shape_cast %44 : vector<1x1x120x120xf32> to vector<120x120xf32>
    %c1_37 = arith.constant 1 : index
    %c0_38 = arith.constant 0 : index
    %c0_39 = arith.constant 0 : index
    %46 = vector.load %arg2[%c1_37, %c0_38, %c0_39] : memref<3x120x120xf32, #tpu.memory_space<vmem>>, vector<1x120x120xf32>
    %47 = vector.shape_cast %46 : vector<1x120x120xf32> to vector<120x120xf32>
    %48 = arith.mulf %45, %47 : vector<120x120xf32>
    %49 = vector.shape_cast %48 : vector<120x120xf32> to vector<1x120x120xf32>
    %cst_40 = arith.constant dense<0.000000e+00> : vector<1xf32>
    %50 = vector.multi_reduction <add>, %49, %cst_40 [1, 2] : vector<1x120x120xf32> to vector<1xf32>
    %51 = vector.shape_cast %50 : vector<1xf32> to vector<1x1x1xf32>
    %52 = vector.extract %51[0, 0, 0] : f32 from vector<1x1x1xf32>
    %53 = arith.addf %43, %52 : f32
    %c1_41 = arith.constant 1 : index
    %c2_42 = arith.constant 2 : index
    %c0_43 = arith.constant 0 : index
    %c0_44 = arith.constant 0 : index
    %54 = vector.load %arg3[%c1_41, %c2_42, %c0_43, %c0_44] : memref<2x3x120x120xf32, #tpu.memory_space<vmem>>, vector<1x1x120x120xf32>
    %55 = vector.shape_cast %54 : vector<1x1x120x120xf32> to vector<120x120xf32>
    %c2_45 = arith.constant 2 : index
    %c0_46 = arith.constant 0 : index
    %c0_47 = arith.constant 0 : index
    %56 = vector.load %arg2[%c2_45, %c0_46, %c0_47] : memref<3x120x120xf32, #tpu.memory_space<vmem>>, vector<1x120x120xf32>
    %57 = vector.shape_cast %56 : vector<1x120x120xf32> to vector<120x120xf32>
    %58 = arith.mulf %55, %57 : vector<120x120xf32>
    %59 = vector.shape_cast %58 : vector<120x120xf32> to vector<1x120x120xf32>
    %cst_48 = arith.constant dense<0.000000e+00> : vector<1xf32>
    %60 = vector.multi_reduction <add>, %59, %cst_48 [1, 2] : vector<1x120x120xf32> to vector<1xf32>
    %61 = vector.shape_cast %60 : vector<1xf32> to vector<1x1x1xf32>
    %62 = vector.extract %61[0, 0, 0] : f32 from vector<1x1x1xf32>
    %63 = arith.addf %53, %62 : f32
    %64 = arith.addf %63, %0 : f32
    %65 = vector.broadcast %64 : f32 to vector<1x1xf32>
    %c1_49 = arith.constant 1 : index
    %c0_50 = arith.constant 0 : index
    %66 = vector.load %arg4[%c1_49, %c0_50] : memref<2x1xf32, #tpu.memory_space<vmem>>, vector<1x1xf32>
    tpu.vector_store %arg4[%c1_49, %c0_50], %65 {strides = array<i32>} : memref<2x1xf32, #tpu.memory_space<vmem>>, vector<1x1xf32>,
    return
  }
  func.func @transform_0(%arg0: i32) -> i32 {
    %c0_i32 = arith.constant 0 : i32
    %c0_i32_0 = arith.constant 0 : i32
    return %c0_i32 : i32
  }
  func.func @transform_1(%arg0: i32) -> (i32, i32, i32) {
    %c0_i32 = arith.constant 0 : i32
    %c0_i32_0 = arith.constant 0 : i32
    %c0_i32_1 = arith.constant 0 : i32
    %c0_i32_2 = arith.constant 0 : i32
    return %c0_i32, %c0_i32_0, %c0_i32_1 : i32, i32, i32
  }
  func.func @transform_2(%arg0: i32) -> (i32, i32, i32, i32) {
    %c0_i32 = arith.constant 0 : i32
    %c0_i32_0 = arith.constant 0 : i32
    %c0_i32_1 = arith.constant 0 : i32
    %c0_i32_2 = arith.constant 0 : i32
    return %arg0, %c0_i32, %c0_i32_0, %c0_i32_1 : i32, i32, i32, i32
  }
  func.func @transform_3(%arg0: i32) -> (i32, i32) {
    %c0_i32 = arith.constant 0 : i32
    %c0_i32_0 = arith.constant 0 : i32
    return %arg0, %c0_i32 : i32, i32
  }
}

</mosaic_0001>

<llo_original>
// kernel: tpu_custom_call.1
$region0: #{tpu_custom_call.1}
  #allocation0 [shape = 'u32[]', space=smem, size = 0x4, offset = 0x4, fixed_abs, tag = 'smem constant byte address 0x4 - core index']
  #allocation1 [shape = 'u32[144,128]{1,0:T(1,128)}', space=vmem, size = 0x12000, scoped, tag = 'internal scratch']
  #allocation2 [shape = 'f32[1]{0:T(128)S(6)}', space=smem, size = 0x200, scoped, tag = 'scoped memory for tpu_custom_call.1']
  %s0 = inlined_call_operand.<no memory space> [shape: f32[1], index: 0, kind: input, shape index: {}]
  %s1 = inlined_call_operand.hbm [shape: f32[3,120,120], index: 1, kind: input, shape index: {}]
  %s2 = inlined_call_operand.hbm [shape: f32[2,3,120,120], index: 2, kind: input, shape index: {}]
  %s3 = inlined_call_operand.vmem [shape: f32[2,1], index: 3, kind: output, shape index: {}]
  %s4 = sld [smem:[#allocation0]]
  $region30: #{tpu_custom_call.1} parent=0
    _
  %s6 = ssub.s32 1, %s4
  %s7 = scalar_select 0, %s6, %s4
  %8 = sst [smem:[#allocation2]] %s0
  $region1: #{tpu_custom_call.1} parent=0
    #allocation3 [shape = 'u8[184320]{0}', space=vmem, size = 0x2d000, scoped, tag = 'input window, operand 1, single buffered']
    #allocation4 [shape = 's32[1]{0}', space=sflag, size = 0x4, scoped, tag = 'scoped memory for tpu_custom_call.1']
    #allocation5 [shape = 'u8[368640]{0}', space=vmem, size = 0x5a000, scoped, tag = 'input window, operand 2, single buffered']
    #allocation6 [shape = 's32[1]{0}', space=sflag, size = 0x4, scoped, tag = 'scoped memory for tpu_custom_call.1']
    %9 = vsyncpa [#allocation4], 0
    %10 = vsyncpa [#allocation6], 0
    // Predicated region
    $region2: #{tpu_custom_call.1} parent=1 // pred_check
      _
    $region3: #{tpu_custom_call.1} parent=1 // pred_check_branch
      %12 = sbr.rel (0) target = $region5
    $region4: #{tpu_custom_call.1} parent=1 // pred_region
      _
    $region5: #{tpu_custom_call.1} parent=1 // pred_fallthru
      _
    // Predicated region
    $region6: #{tpu_custom_call.1} parent=1 // pred_check
      _
    $region7: #{tpu_custom_call.1} parent=1 // pred_check_branch
      %14 = sbr.rel (0) target = $region9
    $region8: #{tpu_custom_call.1} parent=1 // pred_region
      %s16 = ssub.s32 5760, 5760
      %17 = vsyncadd [#allocation4], %s16
      %s18 = sshll.u32 [#allocation3], 4
      %s19 = int_to_ptr.vmem [resolvable:$true] %s18
      %24 = dma.hbm_to_vmem [thread:$0]  %s1, 5760, %s19, [#allocation4], 128, 128, 8
    $region9: #{tpu_custom_call.1} parent=1 // pred_fallthru
      _
    // Predicated region
    $region10: #{tpu_custom_call.1} parent=1 // pred_check
      _
    $region11: #{tpu_custom_call.1} parent=1 // pred_check_branch
      %26 = sbr.rel (0) target = $region13
    $region12: #{tpu_custom_call.1} parent=1 // pred_region
      %s28 = ssub.s32 11520, 11520
      %29 = vsyncadd [#allocation6], %s28
      %s30 = sshll.u32 [#allocation5], 4
      %s31 = int_to_ptr.vmem [resolvable:$true] %s30
      %36 = dma.hbm_to_vmem [thread:$0]  %s2, 11520, %s31, [#allocation6], 128, 128, 8
    $region13: #{tpu_custom_call.1} parent=1 // pred_fallthru
      _
    // Predicated region
    $region14: #{tpu_custom_call.1} parent=1 // pred_check
      _
    $region15: #{tpu_custom_call.1} parent=1 // pred_check_branch
      %38 = sbr.rel (0) target = $region17
    $region16: #{tpu_custom_call.1} parent=1 // pred_region
      %39 = dma.done [#allocation4], 5760
    $region17: #{tpu_custom_call.1} parent=1 // pred_fallthru
      _
    // Predicated region
    $region18: #{tpu_custom_call.1} parent=1 // pred_check
      _
    $region19: #{tpu_custom_call.1} parent=1 // pred_check_branch
      %41 = sbr.rel (0) target = $region21
    $region20: #{tpu_custom_call.1} parent=1 // pred_region
      %42 = dma.done [#allocation6], 11520
    $region21: #{tpu_custom_call.1} parent=1 // pred_fallthru
      _
    %s43 = sld [smem:[#allocation2]]
    %v44 = vld [vmem:[#allocation5] sm:$0xff]
    %v45 = vld [vmem:[#allocation5 + $0x8] sm:$0xff]
    %v46 = vld [vmem:[#allocation5 + $0x10] sm:$0xff]
    %v47 = vld [vmem:[#allocation5 + $0x18] sm:$0xff]
    %v48 = vld [vmem:[#allocation5 + $0x20] sm:$0xff]
    %v49 = vld [vmem:[#allocation5 + $0x28] sm:$0xff]
    %v50 = vld [vmem:[#allocation5 + $0x30] sm:$0xff]
    %v51 = vld [vmem:[#allocation5 + $0x38] sm:$0xff]
    %v52 = vld [vmem:[#allocation5 + $0x40] sm:$0xff]
    %v53 = vld [vmem:[#allocation5 + $0x48] sm:$0xff]
    %v54 = vld [vmem:[#allocation5 + $0x50] sm:$0xff]
    %v55 = vld [vmem:[#allocation5 + $0x58] sm:$0xff]
    %v56 = vld [vmem:[#allocation5 + $0x60] sm:$0xff]
    %v57 = vld [vmem:[#allocation5 + $0x68] sm:$0xff]
    %v58 = vld [vmem:[#allocation5 + $0x70] sm:$0xff]
    %v59 = vld [vmem:[#allocation3] sm:$0xff]
    %v60 = vld [vmem:[#allocation3 + $0x8] sm:$0xff]
    %v61 = vld [vmem:[#allocation3 + $0x10] sm:$0xff]
    %v62 = vld [vmem:[#allocation3 + $0x18] sm:$0xff]
    %v63 = vld [vmem:[#allocation3 + $0x20] sm:$0xff]
    %v64 = vld [vmem:[#allocation3 + $0x28] sm:$0xff]
    %v65 = vld [vmem:[#allocation3 + $0x30] sm:$0xff]
    %v66 = vld [vmem:[#allocation3 + $0x38] sm:$0xff]
    %v67 = vld [vmem:[#allocation3 + $0x40] sm:$0xff]
    %v68 = vld [vmem:[#allocation3 + $0x48] sm:$0xff]
    %v69 = vld [vmem:[#allocation3 + $0x50] sm:$0xff]
    %v70 = vld [vmem:[#allocation3 + $0x58] sm:$0xff]
    %v71 = vld [vmem:[#allocation3 + $0x60] sm:$0xff]
    %v72 = vld [vmem:[#allocation3 + $0x68] sm:$0xff]
    %v73 = vld [vmem:[#allocation3 + $0x70] sm:$0xff]
    %v74 = vmul.f32 %v44, %v59
    %v75 = vmul.f32 %v45, %v60
    %v76 = vmul.f32 %v46, %v61
    %v77 = vmul.f32 %v47, %v62
    %v78 = vmul.f32 %v48, %v63
    %v79 = vmul.f32 %v49, %v64
    %v80 = vmul.f32 %v50, %v65
    %v81 = vmul.f32 %v51, %v66
    %v82 = vmul.f32 %v52, %v67
    %v83 = vmul.f32 %v53, %v68
    %v84 = vmul.f32 %v54, %v69
    %v85 = vmul.f32 %v55, %v70
    %v86 = vmul.f32 %v56, %v71
    %v87 = vmul.f32 %v57, %v72
    %v88 = vmul.f32 %v58, %v73
    %vm89 = vcmask 982016
    %v90 = vsel %vm89, %v74, 0.0
    %v91 = vsel %vm89, %v75, 0.0
    %v92 = vadd.f32 %v90, %v91
    %v93 = vsel %vm89, %v76, 0.0
    %v94 = vadd.f32 %v92, %v93
    %v95 = vsel %vm89, %v77, 0.0
    %v96 = vadd.f32 %v94, %v95
    %v97 = vsel %vm89, %v78, 0.0
    %v98 = vadd.f32 %v96, %v97
    %v99 = vsel %vm89, %v79, 0.0
    %v100 = vadd.f32 %v98, %v99
    %v101 = vsel %vm89, %v80, 0.0
    %v102 = vadd.f32 %v100, %v101
    %v103 = vsel %vm89, %v81, 0.0
    %v104 = vadd.f32 %v102, %v103
    %v105 = vsel %vm89, %v82, 0.0
    %v106 = vadd.f32 %v104, %v105
    %v107 = vsel %vm89, %v83, 0.0
    %v108 = vadd.f32 %v106, %v107
    %v109 = vsel %vm89, %v84, 0.0
    %v110 = vadd.f32 %v108, %v109
    %v111 = vsel %vm89, %v85, 0.0
    %v112 = vadd.f32 %v110, %v111
    %v113 = vsel %vm89, %v86, 0.0
    %v114 = vadd.f32 %v112, %v113
    %v115 = vsel %vm89, %v87, 0.0
    %v116 = vadd.f32 %v114, %v115
    %v117 = vsel %vm89, %v88, 0.0
    %v118 = vadd.f32 %v116, %v117
    %119 = vadd.xlane.f32.xlu0 %v118
    %v120 = vpop.xlane.xlu0 %119
    %v121 = vrot.slane %v120, 4
    %v122 = vadd.f32 %v120, %v121
    %v123 = vrot.slane %v122, 2
    %v124 = vadd.f32 %v122, %v123
    %v125 = vrot.slane %v124, 1
    %v126 = vadd.f32 %v124, %v125
    %s127 = vtos %v126
    %s128 = sadd.f32 %s127, 0.0
    %s129 = scalar_lea.vmem [#allocation5], 120
    %v130 = vld [vmem:[%s129] sm:$0xff]
    %v131 = vld [vmem:[%s129 + $0x8] sm:$0xff]
    %v132 = vld [vmem:[%s129 + $0x10] sm:$0xff]
    %v133 = vld [vmem:[%s129 + $0x18] sm:$0xff]
    %v134 = vld [vmem:[%s129 + $0x20] sm:$0xff]
    %v135 = vld [vmem:[%s129 + $0x28] sm:$0xff]
    %v136 = vld [vmem:[%s129 + $0x30] sm:$0xff]
    %v137 = vld [vmem:[%s129 + $0x38] sm:$0xff]
    %v138 = vld [vmem:[%s129 + $0x40] sm:$0xff]
    %v139 = vld [vmem:[%s129 + $0x48] sm:$0xff]
    %v140 = vld [vmem:[%s129 + $0x50] sm:$0xff]
    %v141 = vld [vmem:[%s129 + $0x58] sm:$0xff]
    %v142 = vld [vmem:[%s129 + $0x60] sm:$0xff]
    %v143 = vld [vmem:[%s129 + $0x68] sm:$0xff]
    %v144 = vld [vmem:[%s129 + $0x70] sm:$0xff]
    %s145 = scalar_lea.vmem [#allocation3], 120
    %v146 = vld [vmem:[%s145] sm:$0xff]
    %v147 = vld [vmem:[%s145 + $0x8] sm:$0xff]
    %v148 = vld [vmem:[%s145 + $0x10] sm:$0xff]
    %v149 = vld [vmem:[%s145 + $0x18] sm:$0xff]
    %v150 = vld [vmem:[%s145 + $0x20] sm:$0xff]
    %v151 = vld [vmem:[%s145 + $0x28] sm:$0xff]
    %v152 = vld [vmem:[%s145 + $0x30] sm:$0xff]
    %v153 = vld [vmem:[%s145 + $0x38] sm:$0xff]
    %v154 = vld [vmem:[%s145 + $0x40] sm:$0xff]
    %v155 = vld [vmem:[%s145 + $0x48] sm:$0xff]
    %v156 = vld [vmem:[%s145 + $0x50] sm:$0xff]
    %v157 = vld [vmem:[%s145 + $0x58] sm:$0xff]
    %v158 = vld [vmem:[%s145 + $0x60] sm:$0xff]
    %v159 = vld [vmem:[%s145 + $0x68] sm:$0xff]
    %v160 = vld [vmem:[%s145 + $0x70] sm:$0xff]
    %v161 = vmul.f32 %v130, %v146
    %v162 = vmul.f32 %v131, %v147
    %v163 = vmul.f32 %v132, %v148
    %v164 = vmul.f32 %v133, %v149
    %v165 = vmul.f32 %v134, %v150
    %v166 = vmul.f32 %v135, %v151
    %v167 = vmul.f32 %v136, %v152
    %v168 = vmul.f32 %v137, %v153
    %v169 = vmul.f32 %v138, %v154
    %v170 = vmul.f32 %v139, %v155
    %v171 = vmul.f32 %v140, %v156
    %v172 = vmul.f32 %v141, %v157
    %v173 = vmul.f32 %v142, %v158
    %v174 = vmul.f32 %v143, %v159
    %v175 = vmul.f32 %v144, %v160
    %v176 = vsel %vm89, %v161, 0.0
    %v177 = vsel %vm89, %v162, 0.0
    %v178 = vadd.f32 %v176, %v177
    %v179 = vsel %vm89, %v163, 0.0
    %v180 = vadd.f32 %v178, %v179
    %v181 = vsel %vm89, %v164, 0.0
    %v182 = vadd.f32 %v180, %v181
    %v183 = vsel %vm89, %v165, 0.0
    %v184 = vadd.f32 %v182, %v183
    %v185 = vsel %vm89, %v166, 0.0
    %v186 = vadd.f32 %v184, %v185
    %v187 = vsel %vm89, %v167, 0.0
    %v188 = vadd.f32 %v186, %v187
    %v189 = vsel %vm89, %v168, 0.0
    %v190 = vadd.f32 %v188, %v189
    %v191 = vsel %vm89, %v169, 0.0
    %v192 = vadd.f32 %v190, %v191
    %v193 = vsel %vm89, %v170, 0.0
    %v194 = vadd.f32 %v192, %v193
    %v195 = vsel %vm89, %v171, 0.0
    %v196 = vadd.f32 %v194, %v195
    %v197 = vsel %vm89, %v172, 0.0
    %v198 = vadd.f32 %v196, %v197
    %v199 = vsel %vm89, %v173, 0.0
    %v200 = vadd.f32 %v198, %v199
    %v201 = vsel %vm89, %v174, 0.0
    %v202 = vadd.f32 %v200, %v201
    %v203 = vsel %vm89, %v175, 0.0
    %v204 = vadd.f32 %v202, %v203
    %205 = vadd.xlane.f32.xlu0 %v204
    %v206 = vpop.xlane.xlu0 %205
    %v207 = vrot.slane %v206, 4
    %v208 = vadd.f32 %v206, %v207
    %v209 = vrot.slane %v208, 2
    %v210 = vadd.f32 %v208, %v209
    %v211 = vrot.slane %v210, 1
    %v212 = vadd.f32 %v210, %v211
    %s213 = vtos %v212
    %s214 = sadd.f32 %s128, %s213
    %s215 = scalar_lea.vmem [#allocation5], 240
    %v216 = vld [vmem:[%s215] sm:$0xff]
    %v217 = vld [vmem:[%s215 + $0x8] sm:$0xff]
    %v218 = vld [vmem:[%s215 + $0x10] sm:$0xff]
    %v219 = vld [vmem:[%s215 + $0x18] sm:$0xff]
    %v220 = vld [vmem:[%s215 + $0x20] sm:$0xff]
    %v221 = vld [vmem:[%s215 + $0x28] sm:$0xff]
    %v222 = vld [vmem:[%s215 + $0x30] sm:$0xff]
    %v223 = vld [vmem:[%s215 + $0x38] sm:$0xff]
    %v224 = vld [vmem:[%s215 + $0x40] sm:$0xff]
    %v225 = vld [vmem:[%s215 + $0x48] sm:$0xff]
    %v226 = vld [vmem:[%s215 + $0x50] sm:$0xff]
    %v227 = vld [vmem:[%s215 + $0x58] sm:$0xff]
    %v228 = vld [vmem:[%s215 + $0x60] sm:$0xff]
    %v229 = vld [vmem:[%s215 + $0x68] sm:$0xff]
    %v230 = vld [vmem:[%s215 + $0x70] sm:$0xff]
    %s231 = scalar_lea.vmem [#allocation3], 240
    %v232 = vld [vmem:[%s231] sm:$0xff]
    %v233 = vld [vmem:[%s231 + $0x8] sm:$0xff]
    %v234 = vld [vmem:[%s231 + $0x10] sm:$0xff]
    %v235 = vld [vmem:[%s231 + $0x18] sm:$0xff]
    %v236 = vld [vmem:[%s231 + $0x20] sm:$0xff]
    %v237 = vld [vmem:[%s231 + $0x28] sm:$0xff]
    %v238 = vld [vmem:[%s231 + $0x30] sm:$0xff]
    %v239 = vld [vmem:[%s231 + $0x38] sm:$0xff]
    %v240 = vld [vmem:[%s231 + $0x40] sm:$0xff]
    %v241 = vld [vmem:[%s231 + $0x48] sm:$0xff]
    %v242 = vld [vmem:[%s231 + $0x50] sm:$0xff]
    %v243 = vld [vmem:[%s231 + $0x58] sm:$0xff]
    %v244 = vld [vmem:[%s231 + $0x60] sm:$0xff]
    %v245 = vld [vmem:[%s231 + $0x68] sm:$0xff]
    %v246 = vld [vmem:[%s231 + $0x70] sm:$0xff]
    %v247 = vmul.f32 %v216, %v232
    %v248 = vmul.f32 %v217, %v233
    %v249 = vmul.f32 %v218, %v234
    %v250 = vmul.f32 %v219, %v235
    %v251 = vmul.f32 %v220, %v236
    %v252 = vmul.f32 %v221, %v237
    %v253 = vmul.f32 %v222, %v238
    %v254 = vmul.f32 %v223, %v239
    %v255 = vmul.f32 %v224, %v240
    %v256 = vmul.f32 %v225, %v241
    %v257 = vmul.f32 %v226, %v242
    %v258 = vmul.f32 %v227, %v243
    %v259 = vmul.f32 %v228, %v244
    %v260 = vmul.f32 %v229, %v245
    %v261 = vmul.f32 %v230, %v246
    %v262 = vsel %vm89, %v247, 0.0
    %v263 = vsel %vm89, %v248, 0.0
    %v264 = vadd.f32 %v262, %v263
    %v265 = vsel %vm89, %v249, 0.0
    %v266 = vadd.f32 %v264, %v265
    %v267 = vsel %vm89, %v250, 0.0
    %v268 = vadd.f32 %v266, %v267
    %v269 = vsel %vm89, %v251, 0.0
    %v270 = vadd.f32 %v268, %v269
    %v271 = vsel %vm89, %v252, 0.0
    %v272 = vadd.f32 %v270, %v271
    %v273 = vsel %vm89, %v253, 0.0
    %v274 = vadd.f32 %v272, %v273
    %v275 = vsel %vm89, %v254, 0.0
    %v276 = vadd.f32 %v274, %v275
    %v277 = vsel %vm89, %v255, 0.0
    %v278 = vadd.f32 %v276, %v277
    %v279 = vsel %vm89, %v256, 0.0
    %v280 = vadd.f32 %v278, %v279
    %v281 = vsel %vm89, %v257, 0.0
    %v282 = vadd.f32 %v280, %v281
    %v283 = vsel %vm89, %v258, 0.0
    %v284 = vadd.f32 %v282, %v283
    %v285 = vsel %vm89, %v259, 0.0
    %v286 = vadd.f32 %v284, %v285
    %v287 = vsel %vm89, %v260, 0.0
    %v288 = vadd.f32 %v286, %v287
    %v289 = vsel %vm89, %v261, 0.0
    %v290 = vadd.f32 %v288, %v289
    %291 = vadd.xlane.f32.xlu0 %v290
    %v292 = vpop.xlane.xlu0 %291
    %v293 = vrot.slane %v292, 4
    %v294 = vadd.f32 %v292, %v293
    %v295 = vrot.slane %v294, 2
    %v296 = vadd.f32 %v294, %v295
    %v297 = vrot.slane %v296, 1
    %v298 = vadd.f32 %v296, %v297
    %s299 = vtos %v298
    %s300 = sadd.f32 %s214, %s299
    %s301 = sadd.f32 %s300, %s43
    %v302 = vstv %s301
    %vm303 = vcmask 0
    %304 = vst.msk [vmem:[%s3] sm:$0x1] %vm303, %v302
    %s305 = scalar_lea.vmem [#allocation5], 360
    %v306 = vld [vmem:[%s305] sm:$0xff]
    %v307 = vld [vmem:[%s305 + $0x8] sm:$0xff]
    %v308 = vld [vmem:[%s305 + $0x10] sm:$0xff]
    %v309 = vld [vmem:[%s305 + $0x18] sm:$0xff]
    %v310 = vld [vmem:[%s305 + $0x20] sm:$0xff]
    %v311 = vld [vmem:[%s305 + $0x28] sm:$0xff]
    %v312 = vld [vmem:[%s305 + $0x30] sm:$0xff]
    %v313 = vld [vmem:[%s305 + $0x38] sm:$0xff]
    %v314 = vld [vmem:[%s305 + $0x40] sm:$0xff]
    %v315 = vld [vmem:[%s305 + $0x48] sm:$0xff]
    %v316 = vld [vmem:[%s305 + $0x50] sm:$0xff]
    %v317 = vld [vmem:[%s305 + $0x58] sm:$0xff]
    %v318 = vld [vmem:[%s305 + $0x60] sm:$0xff]
    %v319 = vld [vmem:[%s305 + $0x68] sm:$0xff]
    %v320 = vld [vmem:[%s305 + $0x70] sm:$0xff]
    %v321 = vld [vmem:[#allocation3] sm:$0xff]
    %v322 = vld [vmem:[#allocation3 + $0x8] sm:$0xff]
    %v323 = vld [vmem:[#allocation3 + $0x10] sm:$0xff]
    %v324 = vld [vmem:[#allocation3 + $0x18] sm:$0xff]
    %v325 = vld [vmem:[#allocation3 + $0x20] sm:$0xff]
    %v326 = vld [vmem:[#allocation3 + $0x28] sm:$0xff]
    %v327 = vld [vmem:[#allocation3 + $0x30] sm:$0xff]
    %v328 = vld [vmem:[#allocation3 + $0x38] sm:$0xff]
    %v329 = vld [vmem:[#allocation3 + $0x40] sm:$0xff]
    %v330 = vld [vmem:[#allocation3 + $0x48] sm:$0xff]
    %v331 = vld [vmem:[#allocation3 + $0x50] sm:$0xff]
    %v332 = vld [vmem:[#allocation3 + $0x58] sm:$0xff]
    %v333 = vld [vmem:[#allocation3 + $0x60] sm:$0xff]
    %v334 = vld [vmem:[#allocation3 + $0x68] sm:$0xff]
    %v335 = vld [vmem:[#allocation3 + $0x70] sm:$0xff]
    %v336 = vmul.f32 %v306, %v321
    %v337 = vmul.f32 %v307, %v322
    %v338 = vmul.f32 %v308, %v323
    %v339 = vmul.f32 %v309, %v324
    %v340 = vmul.f32 %v310, %v325
    %v341 = vmul.f32 %v311, %v326
    %v342 = vmul.f32 %v312, %v327
    %v343 = vmul.f32 %v313, %v328
    %v344 = vmul.f32 %v314, %v329
    %v345 = vmul.f32 %v315, %v330
    %v346 = vmul.f32 %v316, %v331
    %v347 = vmul.f32 %v317, %v332
    %v348 = vmul.f32 %v318, %v333
    %v349 = vmul.f32 %v319, %v334
    %v350 = vmul.f32 %v320, %v335
    %v351 = vsel %vm89, %v336, 0.0
    %v352 = vsel %vm89, %v337, 0.0
    %v353 = vadd.f32 %v351, %v352
    %v354 = vsel %vm89, %v338, 0.0
    %v355 = vadd.f32 %v353, %v354
    %v356 = vsel %vm89, %v339, 0.0
    %v357 = vadd.f32 %v355, %v356
    %v358 = vsel %vm89, %v340, 0.0
    %v359 = vadd.f32 %v357, %v358
    %v360 = vsel %vm89, %v341, 0.0
    %v361 = vadd.f32 %v359, %v360
    %v362 = vsel %vm89, %v342, 0.0
    %v363 = vadd.f32 %v361, %v362
    %v364 = vsel %vm89, %v343, 0.0
    %v365 = vadd.f32 %v363, %v364
    %v366 = vsel %vm89, %v344, 0.0
    %v367 = vadd.f32 %v365, %v366
    %v368 = vsel %vm89, %v345, 0.0
    %v369 = vadd.f32 %v367, %v368
    %v370 = vsel %vm89, %v346, 0.0
    %v371 = vadd.f32 %v369, %v370
    %v372 = vsel %vm89, %v347, 0.0
    %v373 = vadd.f32 %v371, %v372
    %v374 = vsel %vm89, %v348, 0.0
    %v375 = vadd.f32 %v373, %v374
    %v376 = vsel %vm89, %v349, 0.0
    %v377 = vadd.f32 %v375, %v376
    %v378 = vsel %vm89, %v350, 0.0
    %v379 = vadd.f32 %v377, %v378
    %380 = vadd.xlane.f32.xlu0 %v379
    %v381 = vpop.xlane.xlu0 %380
    %v382 = vrot.slane %v381, 4
    %v383 = vadd.f32 %v381, %v382
    %v384 = vrot.slane %v383, 2
    %v385 = vadd.f32 %v383, %v384
    %v386 = vrot.slane %v385, 1
    %v387 = vadd.f32 %v385, %v386
    %s388 = vtos %v387
    %s389 = sadd.f32 %s388, 0.0
    %s390 = scalar_lea.vmem [#allocation5], 480
    %v391 = vld [vmem:[%s390] sm:$0xff]
    %v392 = vld [vmem:[%s390 + $0x8] sm:$0xff]
    %v393 = vld [vmem:[%s390 + $0x10] sm:$0xff]
    %v394 = vld [vmem:[%s390 + $0x18] sm:$0xff]
    %v395 = vld [vmem:[%s390 + $0x20] sm:$0xff]
    %v396 = vld [vmem:[%s390 + $0x28] sm:$0xff]
    %v397 = vld [vmem:[%s390 + $0x30] sm:$0xff]
    %v398 = vld [vmem:[%s390 + $0x38] sm:$0xff]
    %v399 = vld [vmem:[%s390 + $0x40] sm:$0xff]
    %v400 = vld [vmem:[%s390 + $0x48] sm:$0xff]
    %v401 = vld [vmem:[%s390 + $0x50] sm:$0xff]
    %v402 = vld [vmem:[%s390 + $0x58] sm:$0xff]
    %v403 = vld [vmem:[%s390 + $0x60] sm:$0xff]
    %v404 = vld [vmem:[%s390 + $0x68] sm:$0xff]
    %v405 = vld [vmem:[%s390 + $0x70] sm:$0xff]
    %v406 = vld [vmem:[%s145] sm:$0xff]
    %v407 = vld [vmem:[%s145 + $0x8] sm:$0xff]
    %v408 = vld [vmem:[%s145 + $0x10] sm:$0xff]
    %v409 = vld [vmem:[%s145 + $0x18] sm:$0xff]
    %v410 = vld [vmem:[%s145 + $0x20] sm:$0xff]
    %v411 = vld [vmem:[%s145 + $0x28] sm:$0xff]
    %v412 = vld [vmem:[%s145 + $0x30] sm:$0xff]
    %v413 = vld [vmem:[%s145 + $0x38] sm:$0xff]
    %v414 = vld [vmem:[%s145 + $0x40] sm:$0xff]
    %v415 = vld [vmem:[%s145 + $0x48] sm:$0xff]
    %v416 = vld [vmem:[%s145 + $0x50] sm:$0xff]
    %v417 = vld [vmem:[%s145 + $0x58] sm:$0xff]
    %v418 = vld [vmem:[%s145 + $0x60] sm:$0xff]
    %v419 = vld [vmem:[%s145 + $0x68] sm:$0xff]
    %v420 = vld [vmem:[%s145 + $0x70] sm:$0xff]
    %v421 = vmul.f32 %v391, %v406
    %v422 = vmul.f32 %v392, %v407
    %v423 = vmul.f32 %v393, %v408
    %v424 = vmul.f32 %v394, %v409
    %v425 = vmul.f32 %v395, %v410
    %v426 = vmul.f32 %v396, %v411
    %v427 = vmul.f32 %v397, %v412
    %v428 = vmul.f32 %v398, %v413
    %v429 = vmul.f32 %v399, %v414
    %v430 = vmul.f32 %v400, %v415
    %v431 = vmul.f32 %v401, %v416
    %v432 = vmul.f32 %v402, %v417
    %v433 = vmul.f32 %v403, %v418
    %v434 = vmul.f32 %v404, %v419
    %v435 = vmul.f32 %v405, %v420
    %v436 = vsel %vm89, %v421, 0.0
    %v437 = vsel %vm89, %v422, 0.0
    %v438 = vadd.f32 %v436, %v437
    %v439 = vsel %vm89, %v423, 0.0
    %v440 = vadd.f32 %v438, %v439
    %v441 = vsel %vm89, %v424, 0.0
    %v442 = vadd.f32 %v440, %v441
    %v443 = vsel %vm89, %v425, 0.0
    %v444 = vadd.f32 %v442, %v443
    %v445 = vsel %vm89, %v426, 0.0
    %v446 = vadd.f32 %v444, %v445
    %v447 = vsel %vm89, %v427, 0.0
    %v448 = vadd.f32 %v446, %v447
    %v449 = vsel %vm89, %v428, 0.0
    %v450 = vadd.f32 %v448, %v449
    %v451 = vsel %vm89, %v429, 0.0
    %v452 = vadd.f32 %v450, %v451
    %v453 = vsel %vm89, %v430, 0.0
    %v454 = vadd.f32 %v452, %v453
    %v455 = vsel %vm89, %v431, 0.0
    %v456 = vadd.f32 %v454, %v455
    %v457 = vsel %vm89, %v432, 0.0
    %v458 = vadd.f32 %v456, %v457
    %v459 = vsel %vm89, %v433, 0.0
    %v460 = vadd.f32 %v458, %v459
    %v461 = vsel %vm89, %v434, 0.0
    %v462 = vadd.f32 %v460, %v461
    %v463 = vsel %vm89, %v435, 0.0
    %v464 = vadd.f32 %v462, %v463
    %465 = vadd.xlane.f32.xlu0 %v464
    %v466 = vpop.xlane.xlu0 %465
    %v467 = vrot.slane %v466, 4
    %v468 = vadd.f32 %v466, %v467
    %v469 = vrot.slane %v468, 2
    %v470 = vadd.f32 %v468, %v469
    %v471 = vrot.slane %v470, 1
    %v472 = vadd.f32 %v470, %v471
    %s473 = vtos %v472
    %s474 = sadd.f32 %s389, %s473
    %s475 = scalar_lea.vmem [#allocation5], 600
    %v476 = vld [vmem:[%s475] sm:$0xff]
    %v477 = vld [vmem:[%s475 + $0x8] sm:$0xff]
    %v478 = vld [vmem:[%s475 + $0x10] sm:$0xff]
    %v479 = vld [vmem:[%s475 + $0x18] sm:$0xff]
    %v480 = vld [vmem:[%s475 + $0x20] sm:$0xff]
    %v481 = vld [vmem:[%s475 + $0x28] sm:$0xff]
    %v482 = vld [vmem:[%s475 + $0x30] sm:$0xff]
    %v483 = vld [vmem:[%s475 + $0x38] sm:$0xff]
    %v484 = vld [vmem:[%s475 + $0x40] sm:$0xff]
    %v485 = vld [vmem:[%s475 + $0x48] sm:$0xff]
    %v486 = vld [vmem:[%s475 + $0x50] sm:$0xff]
    %v487 = vld [vmem:[%s475 + $0x58] sm:$0xff]
    %v488 = vld [vmem:[%s475 + $0x60] sm:$0xff]
    %v489 = vld [vmem:[%s475 + $0x68] sm:$0xff]
    %v490 = vld [vmem:[%s475 + $0x70] sm:$0xff]
    %v491 = vld [vmem:[%s231] sm:$0xff]
    %v492 = vld [vmem:[%s231 + $0x8] sm:$0xff]
    %v493 = vld [vmem:[%s231 + $0x10] sm:$0xff]
    %v494 = vld [vmem:[%s231 + $0x18] sm:$0xff]
    %v495 = vld [vmem:[%s231 + $0x20] sm:$0xff]
    %v496 = vld [vmem:[%s231 + $0x28] sm:$0xff]
    %v497 = vld [vmem:[%s231 + $0x30] sm:$0xff]
    %v498 = vld [vmem:[%s231 + $0x38] sm:$0xff]
    %v499 = vld [vmem:[%s231 + $0x40] sm:$0xff]
    %v500 = vld [vmem:[%s231 + $0x48] sm:$0xff]
    %v501 = vld [vmem:[%s231 + $0x50] sm:$0xff]
    %v502 = vld [vmem:[%s231 + $0x58] sm:$0xff]
    %v503 = vld [vmem:[%s231 + $0x60] sm:$0xff]
    %v504 = vld [vmem:[%s231 + $0x68] sm:$0xff]
    %v505 = vld [vmem:[%s231 + $0x70] sm:$0xff]
    %v506 = vmul.f32 %v476, %v491
    %v507 = vmul.f32 %v477, %v492
    %v508 = vmul.f32 %v478, %v493
    %v509 = vmul.f32 %v479, %v494
    %v510 = vmul.f32 %v480, %v495
    %v511 = vmul.f32 %v481, %v496
    %v512 = vmul.f32 %v482, %v497
    %v513 = vmul.f32 %v483, %v498
    %v514 = vmul.f32 %v484, %v499
    %v515 = vmul.f32 %v485, %v500
    %v516 = vmul.f32 %v486, %v501
    %v517 = vmul.f32 %v487, %v502
    %v518 = vmul.f32 %v488, %v503
    %v519 = vmul.f32 %v489, %v504
    %v520 = vmul.f32 %v490, %v505
    %v521 = vsel %vm89, %v506, 0.0
    %v522 = vsel %vm89, %v507, 0.0
    %v523 = vadd.f32 %v521, %v522
    %v524 = vsel %vm89, %v508, 0.0
    %v525 = vadd.f32 %v523, %v524
    %v526 = vsel %vm89, %v509, 0.0
    %v527 = vadd.f32 %v525, %v526
    %v528 = vsel %vm89, %v510, 0.0
    %v529 = vadd.f32 %v527, %v528
    %v530 = vsel %vm89, %v511, 0.0
    %v531 = vadd.f32 %v529, %v530
    %v532 = vsel %vm89, %v512, 0.0
    %v533 = vadd.f32 %v531, %v532
    %v534 = vsel %vm89, %v513, 0.0
    %v535 = vadd.f32 %v533, %v534
    %v536 = vsel %vm89, %v514, 0.0
    %v537 = vadd.f32 %v535, %v536
    %v538 = vsel %vm89, %v515, 0.0
    %v539 = vadd.f32 %v537, %v538
    %v540 = vsel %vm89, %v516, 0.0
    %v541 = vadd.f32 %v539, %v540
    %v542 = vsel %vm89, %v517, 0.0
    %v543 = vadd.f32 %v541, %v542
    %v544 = vsel %vm89, %v518, 0.0
    %v545 = vadd.f32 %v543, %v544
    %v546 = vsel %vm89, %v519, 0.0
    %v547 = vadd.f32 %v545, %v546
    %v548 = vsel %vm89, %v520, 0.0
    %v549 = vadd.f32 %v547, %v548
    %550 = vadd.xlane.f32.xlu0 %v549
    %v551 = vpop.xlane.xlu0 %550
    %v552 = vrot.slane %v551, 4
    %v553 = vadd.f32 %v551, %v552
    %v554 = vrot.slane %v553, 2
    %v555 = vadd.f32 %v553, %v554
    %v556 = vrot.slane %v555, 1
    %v557 = vadd.f32 %v555, %v556
    %s558 = vtos %v557
    %s559 = sadd.f32 %s474, %s558
    %s560 = sadd.f32 %s559, %s43
    %v561 = vstv %s560
    %562 = vst.msk [vmem:[%s3 + $0x1] sm:$0x1] %vm303, %v561
    // Predicated region
    $region22: #{tpu_custom_call.1} parent=1 // pred_check
      _
    $region23: #{tpu_custom_call.1} parent=1 // pred_check_branch
      %564 = sbr.rel (0) target = $region25
    $region24: #{tpu_custom_call.1} parent=1 // pred_region
      _
    $region25: #{tpu_custom_call.1} parent=1 // pred_fallthru
      _
    // Predicated region
    $region26: #{tpu_custom_call.1} parent=1 // pred_check
      _
    $region27: #{tpu_custom_call.1} parent=1 // pred_check_branch
      %566 = sbr.rel (0) target = $region29
    $region28: #{tpu_custom_call.1} parent=1 // pred_region
      _
    $region29: #{tpu_custom_call.1} parent=1 // pred_fallthru
      _
    %567 = vsyncpa [#allocation4], 1
    %568 = vsyncpa [#allocation6], 1

</llo_original>
